<compile_context>
chip_gen: v7x
topology: tpu7x:2x2x1
jax: 0.10.0
libtpu: 0.0.40
codegen_flags: <defaults>
</compile_context>

<pallas_src>
import jax
import jax.numpy as jnp
from jax import lax
from jax.experimental import pallas as pl
from jax.experimental.pallas import tpu as pltpu
import numpy as np


def _rnn_kernel(x_ref, wihT_ref, whhT_ref, b_ref, out_ref):
    """All tensors resident in VMEM (total footprint ~12 KB per batch block).

    x_ref    : (Bb, T, D)  input block (batch_first layout, no wrapper transpose)
    wihT_ref : (D, H)      W_ih transposed
    whhT_ref : (H, H)      W_hh transposed
    b_ref    : (1, H)      b_ih + b_hh (combined)
    out_ref  : (Bb, T*H)   hidden states, columns [t*H:(t+1)*H] = h_t
    """
    Bb, T, D = x_ref.shape
    H = whhT_ref.shape[0]

    # Hoisted loads: weights / bias live in vregs for the whole recurrence.
    wihT = wihT_ref[...]                                   # (D, H)
    whhT = whhT_ref[...]                                   # (H, H)
    bias = jnp.broadcast_to(b_ref[...], (Bb, H))           # broadcast once, not per step

    # t = 0 peeled: h_0 == 0, so there is no recurrent matmul on the first step.
    h = jnp.tanh(
        jnp.dot(x_ref[:, 0, :], wihT, preferred_element_type=jnp.float32) + bias)
    out_ref[:, 0:H] = h

    # Serial recurrence, fully unrolled (T static & tiny), hidden state in vregs.
    # The x-projection dots depend only on inputs, so the scheduler can issue them
    # during the MXU idle time of the h @ W_hh^T latency chain.
    for t in range(1, T):                                  # static unroll
        xp = jnp.dot(x_ref[:, t, :], wihT,
                     preferred_element_type=jnp.float32) + bias        # (Bb, H)
        hh = jnp.dot(h, whhT, preferred_element_type=jnp.float32)      # (Bb, H)
        h = jnp.tanh(xp + hh)
        out_ref[:, t * H:(t + 1) * H] = h                  # per-step lane-slice store


def prepare_rnn_params(w_ih, w_hh, b_ih, b_hh):
    """One-time parameter prep — hoisted out of the per-call forward path."""
    wihT = jnp.asarray(w_ih, jnp.float32).T                # (D, H)
    whhT = jnp.asarray(w_hh, jnp.float32).T                # (H, H)
    b = (jnp.asarray(b_ih, jnp.float32)
         + jnp.asarray(b_hh, jnp.float32)).reshape(1, -1)  # (1, H)
    return wihT, whhT, b


def simple_rnn_encoder(x, wihT, whhT, b):
    """x: (B, T, D) float32; params already prepped. Returns (outputs, hidden)."""
    B, T, D = x.shape
    H = whhT.shape[0]

    # Batch block: sublane-multiple when possible so larger B shards across the
    # grid (and across v7x's two TensorCores via "parallel"); full B otherwise.
    Bb = 8 if B % 8 == 0 else B
    grid = (B // Bb,)

    out_flat = pl.pallas_call(
        _rnn_kernel,
        out_shape=jax.ShapeDtypeStruct((B, T * H), jnp.float32),
        grid=grid,
        in_specs=[
            pl.BlockSpec((Bb, T, D), lambda i: (i, 0, 0)),   # x block over batch
            pl.BlockSpec((D, H), lambda i: (0, 0)),          # W_ih^T (replicated)
            pl.BlockSpec((H, H), lambda i: (0, 0)),          # W_hh^T (replicated)
            pl.BlockSpec((1, H), lambda i: (0, 0)),          # bias   (replicated)
        ],
        out_specs=pl.BlockSpec((Bb, T * H), lambda i: (i, 0)),
        compiler_params=pltpu.CompilerParams(
            dimension_semantics=("parallel",)),
    )(x, wihT, whhT, b)

    outputs = out_flat.reshape(B, T, H)
    hidden = outputs[:, -1, :][None]                       # (num_layers=1, B, H)
    return outputs, hidden


_simple_rnn_encoder_jit = jax.jit(simple_rnn_encoder)


def _rnn_reference(x, w_ih, w_hh, b_ih, b_hh):
    """Pure-JAX reference matching PyTorch nn.RNN(batch_first=True)."""
    B, T, D = x.shape
    H = w_hh.shape[0]
    h0 = jnp.zeros((B, H), jnp.float32)

    def step(h, xt):
        h_new = jnp.tanh(xt @ w_ih.T + b_ih + h @ w_hh.T + b_hh)
        return h_new, h_new

    hT, outs = lax.scan(step, h0, jnp.swapaxes(x, 0, 1))
    return jnp.swapaxes(outs, 0, 1), hT[None]


if __name__ == "__main__":
    B, T, D, H = 2, 8, 16, 32   # batch, seq, target_size, hidden_size

    key = jax.random.PRNGKey(0)
    kx, k1, k2, k3, k4 = jax.random.split(key, 5)

    # PyTorch nn.RNN init: uniform(-1/sqrt(H), 1/sqrt(H))
    bound = 1.0 / np.sqrt(H)
    x = jax.random.normal(kx, (B, T, D), jnp.float32)
    w_ih = jax.random.uniform(k1, (H, D), jnp.float32, -bound, bound)
    w_hh = jax.random.uniform(k2, (H, H), jnp.float32, -bound, bound)
    b_ih = jax.random.uniform(k3, (H,), jnp.float32, -bound, bound)
    b_hh = jax.random.uniform(k4, (H,), jnp.float32, -bound, bound)

    # Parameter prep done ONCE (module init time), not per forward call.
    wihT, whhT, b = prepare_rnn_params(w_ih, w_hh, b_ih, b_hh)
    wihT, whhT, b = jax.block_until_ready((wihT, whhT, b))

    outputs, hidden = _simple_rnn_encoder_jit(x, wihT, whhT, b)
    jax.block_until_ready((outputs, hidden))

    ref_out, ref_hid = _rnn_reference(x, w_ih, w_hh, b_ih, b_hh)
    np.testing.assert_allclose(np.asarray(outputs), np.asarray(ref_out),
                               rtol=1e-5, atol=1e-5)
    np.testing.assert_allclose(np.asarray(hidden), np.asarray(ref_hid),
                               rtol=1e-5, atol=1e-5)
    assert outputs.shape == (B, T, H) and hidden.shape == (1, B, H)

    print("KERNEL_OK")
</pallas_src>

<mosaic_0001>
module attributes {stable_mosaic.version = 11 : i64} {
  func.func @_rnn_kernel(%arg0: i32, %arg1: memref<2x8x16xf32, #tpu.memory_space<vmem>>, %arg2: memref<16x32xf32, #tpu.memory_space<vmem>>, %arg3: memref<32x32xf32, #tpu.memory_space<vmem>>, %arg4: memref<1x32xf32, #tpu.memory_space<vmem>>, %arg5: memref<2x256xf32, #tpu.memory_space<vmem>>) attributes {dimension_semantics = [#tpu.dimension_semantics<parallel>], iteration_bounds = array<i64: 1>, scalar_prefetch = 0 : i64, scratch_operands = 0 : i64, tpu.core_type = #tpu.core_type<tc>, window_params = [{transform_indices = @transform_0, window_bounds = array<i64: 2, 8, 16>}, {pipeline_mode = #tpu.pipeline_mode<synchronous>, transform_indices = @transform_1, window_bounds = array<i64: 16, 32>}, {pipeline_mode = #tpu.pipeline_mode<synchronous>, transform_indices = @transform_2, window_bounds = array<i64: 32, 32>}, {pipeline_mode = #tpu.pipeline_mode<synchronous>, transform_indices = @transform_3, window_bounds = array<i64: 1, 32>}, {transform_indices = @transform_4, window_bounds = array<i64: 2, 256>}]} {
    %c0 = arith.constant 0 : index
    %c0_0 = arith.constant 0 : index
    %0 = vector.load %arg2[%c0, %c0_0] : memref<16x32xf32, #tpu.memory_space<vmem>>, vector<16x32xf32>
    %c0_1 = arith.constant 0 : index
    %c0_2 = arith.constant 0 : index
    %1 = vector.load %arg3[%c0_1, %c0_2] : memref<32x32xf32, #tpu.memory_space<vmem>>, vector<32x32xf32>
    %c0_3 = arith.constant 0 : index
    %c0_4 = arith.constant 0 : index
    %2 = vector.load %arg4[%c0_3, %c0_4] : memref<1x32xf32, #tpu.memory_space<vmem>>, vector<1x32xf32>
    %3 = vector.shape_cast %2 : vector<1x32xf32> to vector<1x32xf32>
    %4 = vector.broadcast %3 : vector<1x32xf32> to vector<2x32xf32>
    %c0_5 = arith.constant 0 : index
    %c0_6 = arith.constant 0 : index
    %c0_7 = arith.constant 0 : index
    %5 = vector.load %arg1[%c0_5, %c0_6, %c0_7] : memref<2x8x16xf32, #tpu.memory_space<vmem>>, vector<2x1x16xf32>
    %6 = vector.shape_cast %5 : vector<2x1x16xf32> to vector<2x16xf32>
    %cst = arith.constant dense<0.000000e+00> : vector<2x32xf32>
    %7 = tpu.matmul %6, %0, %cst {dimension_numbers = #tpu.dot_dimension_numbers<[1], [0], [0], [1], [0, 0, 1, 1], [], []>} : vector<2x16xf32>, vector<16x32xf32>, vector<2x32xf32> -> vector<2x32xf32>
    %8 = arith.addf %7, %4 : vector<2x32xf32>
    %9 = math.tanh %8 : vector<2x32xf32>
    %c0_8 = arith.constant 0 : index
    %c0_9 = arith.constant 0 : index
    %10 = vector.load %arg5[%c0_8, %c0_9] : memref<2x256xf32, #tpu.memory_space<vmem>>, vector<2x32xf32>
    tpu.vector_store %arg5[%c0_8, %c0_9], %9 {strides = array<i32>} : memref<2x256xf32, #tpu.memory_space<vmem>>, vector<2x32xf32>,
    %c0_10 = arith.constant 0 : index
    %c1 = arith.constant 1 : index
    %c0_11 = arith.constant 0 : index
    %11 = vector.load %arg1[%c0_10, %c1, %c0_11] : memref<2x8x16xf32, #tpu.memory_space<vmem>>, vector<2x1x16xf32>
    %12 = vector.shape_cast %11 : vector<2x1x16xf32> to vector<2x16xf32>
    %cst_12 = arith.constant dense<0.000000e+00> : vector<2x32xf32>
    %13 = tpu.matmul %12, %0, %cst_12 {dimension_numbers = #tpu.dot_dimension_numbers<[1], [0], [0], [1], [0, 0, 1, 1], [], []>} : vector<2x16xf32>, vector<16x32xf32>, vector<2x32xf32> -> vector<2x32xf32>
    %14 = arith.addf %13, %4 : vector<2x32xf32>
    %cst_13 = arith.constant dense<0.000000e+00> : vector<2x32xf32>
    %15 = tpu.matmul %9, %1, %cst_13 {dimension_numbers = #tpu.dot_dimension_numbers<[1], [0], [0], [1], [0, 0, 1, 1], [], []>} : vector<2x32xf32>, vector<32x32xf32>, vector<2x32xf32> -> vector<2x32xf32>
    %16 = arith.addf %14, %15 : vector<2x32xf32>
    %17 = math.tanh %16 : vector<2x32xf32>
    %c0_14 = arith.constant 0 : index
    %c32 = arith.constant 32 : index
    %18 = vector.load %arg5[%c0_14, %c32] : memref<2x256xf32, #tpu.memory_space<vmem>>, vector<2x32xf32>
    tpu.vector_store %arg5[%c0_14, %c32], %17 {strides = array<i32>} : memref<2x256xf32, #tpu.memory_space<vmem>>, vector<2x32xf32>,
    %c0_15 = arith.constant 0 : index
    %c2 = arith.constant 2 : index
    %c0_16 = arith.constant 0 : index
    %19 = vector.load %arg1[%c0_15, %c2, %c0_16] : memref<2x8x16xf32, #tpu.memory_space<vmem>>, vector<2x1x16xf32>
    %20 = vector.shape_cast %19 : vector<2x1x16xf32> to vector<2x16xf32>
    %cst_17 = arith.constant dense<0.000000e+00> : vector<2x32xf32>
    %21 = tpu.matmul %20, %0, %cst_17 {dimension_numbers = #tpu.dot_dimension_numbers<[1], [0], [0], [1], [0, 0, 1, 1], [], []>} : vector<2x16xf32>, vector<16x32xf32>, vector<2x32xf32> -> vector<2x32xf32>
    %22 = arith.addf %21, %4 : vector<2x32xf32>
    %cst_18 = arith.constant dense<0.000000e+00> : vector<2x32xf32>
    %23 = tpu.matmul %17, %1, %cst_18 {dimension_numbers = #tpu.dot_dimension_numbers<[1], [0], [0], [1], [0, 0, 1, 1], [], []>} : vector<2x32xf32>, vector<32x32xf32>, vector<2x32xf32> -> vector<2x32xf32>
    %24 = arith.addf %22, %23 : vector<2x32xf32>
    %25 = math.tanh %24 : vector<2x32xf32>
    %c0_19 = arith.constant 0 : index
    %c64 = arith.constant 64 : index
    %26 = vector.load %arg5[%c0_19, %c64] : memref<2x256xf32, #tpu.memory_space<vmem>>, vector<2x32xf32>
    tpu.vector_store %arg5[%c0_19, %c64], %25 {strides = array<i32>} : memref<2x256xf32, #tpu.memory_space<vmem>>, vector<2x32xf32>,
    %c0_20 = arith.constant 0 : index
    %c3 = arith.constant 3 : index
    %c0_21 = arith.constant 0 : index
    %27 = vector.load %arg1[%c0_20, %c3, %c0_21] : memref<2x8x16xf32, #tpu.memory_space<vmem>>, vector<2x1x16xf32>
    %28 = vector.shape_cast %27 : vector<2x1x16xf32> to vector<2x16xf32>
    %cst_22 = arith.constant dense<0.000000e+00> : vector<2x32xf32>
    %29 = tpu.matmul %28, %0, %cst_22 {dimension_numbers = #tpu.dot_dimension_numbers<[1], [0], [0], [1], [0, 0, 1, 1], [], []>} : vector<2x16xf32>, vector<16x32xf32>, vector<2x32xf32> -> vector<2x32xf32>
    %30 = arith.addf %29, %4 : vector<2x32xf32>
    %cst_23 = arith.constant dense<0.000000e+00> : vector<2x32xf32>
    %31 = tpu.matmul %25, %1, %cst_23 {dimension_numbers = #tpu.dot_dimension_numbers<[1], [0], [0], [1], [0, 0, 1, 1], [], []>} : vector<2x32xf32>, vector<32x32xf32>, vector<2x32xf32> -> vector<2x32xf32>
    %32 = arith.addf %30, %31 : vector<2x32xf32>
    %33 = math.tanh %32 : vector<2x32xf32>
    %c0_24 = arith.constant 0 : index
    %c96 = arith.constant 96 : index
    %34 = vector.load %arg5[%c0_24, %c96] : memref<2x256xf32, #tpu.memory_space<vmem>>, vector<2x32xf32>
    tpu.vector_store %arg5[%c0_24, %c96], %33 {strides = array<i32>} : memref<2x256xf32, #tpu.memory_space<vmem>>, vector<2x32xf32>,
    %c0_25 = arith.constant 0 : index
    %c4 = arith.constant 4 : index
    %c0_26 = arith.constant 0 : index
    %35 = vector.load %arg1[%c0_25, %c4, %c0_26] : memref<2x8x16xf32, #tpu.memory_space<vmem>>, vector<2x1x16xf32>
    %36 = vector.shape_cast %35 : vector<2x1x16xf32> to vector<2x16xf32>
    %cst_27 = arith.constant dense<0.000000e+00> : vector<2x32xf32>
    %37 = tpu.matmul %36, %0, %cst_27 {dimension_numbers = #tpu.dot_dimension_numbers<[1], [0], [0], [1], [0, 0, 1, 1], [], []>} : vector<2x16xf32>, vector<16x32xf32>, vector<2x32xf32> -> vector<2x32xf32>
    %38 = arith.addf %37, %4 : vector<2x32xf32>
    %cst_28 = arith.constant dense<0.000000e+00> : vector<2x32xf32>
    %39 = tpu.matmul %33, %1, %cst_28 {dimension_numbers = #tpu.dot_dimension_numbers<[1], [0], [0], [1], [0, 0, 1, 1], [], []>} : vector<2x32xf32>, vector<32x32xf32>, vector<2x32xf32> -> vector<2x32xf32>
    %40 = arith.addf %38, %39 : vector<2x32xf32>
    %41 = math.tanh %40 : vector<2x32xf32>
    %c0_29 = arith.constant 0 : index
    %c128 = arith.constant 128 : index
    %42 = vector.load %arg5[%c0_29, %c128] : memref<2x256xf32, #tpu.memory_space<vmem>>, vector<2x32xf32>
    tpu.vector_store %arg5[%c0_29, %c128], %41 {strides = array<i32>} : memref<2x256xf32, #tpu.memory_space<vmem>>, vector<2x32xf32>,
    %c0_30 = arith.constant 0 : index
    %c5 = arith.constant 5 : index
    %c0_31 = arith.constant 0 : index
    %43 = vector.load %arg1[%c0_30, %c5, %c0_31] : memref<2x8x16xf32, #tpu.memory_space<vmem>>, vector<2x1x16xf32>
    %44 = vector.shape_cast %43 : vector<2x1x16xf32> to vector<2x16xf32>
    %cst_32 = arith.constant dense<0.000000e+00> : vector<2x32xf32>
    %45 = tpu.matmul %44, %0, %cst_32 {dimension_numbers = #tpu.dot_dimension_numbers<[1], [0], [0], [1], [0, 0, 1, 1], [], []>} : vector<2x16xf32>, vector<16x32xf32>, vector<2x32xf32> -> vector<2x32xf32>
    %46 = arith.addf %45, %4 : vector<2x32xf32>
    %cst_33 = arith.constant dense<0.000000e+00> : vector<2x32xf32>
    %47 = tpu.matmul %41, %1, %cst_33 {dimension_numbers = #tpu.dot_dimension_numbers<[1], [0], [0], [1], [0, 0, 1, 1], [], []>} : vector<2x32xf32>, vector<32x32xf32>, vector<2x32xf32> -> vector<2x32xf32>
    %48 = arith.addf %46, %47 : vector<2x32xf32>
    %49 = math.tanh %48 : vector<2x32xf32>
    %c0_34 = arith.constant 0 : index
    %c160 = arith.constant 160 : index
    %50 = vector.load %arg5[%c0_34, %c160] : memref<2x256xf32, #tpu.memory_space<vmem>>, vector<2x32xf32>
    tpu.vector_store %arg5[%c0_34, %c160], %49 {strides = array<i32>} : memref<2x256xf32, #tpu.memory_space<vmem>>, vector<2x32xf32>,
    %c0_35 = arith.constant 0 : index
    %c6 = arith.constant 6 : index
    %c0_36 = arith.constant 0 : index
    %51 = vector.load %arg1[%c0_35, %c6, %c0_36] : memref<2x8x16xf32, #tpu.memory_space<vmem>>, vector<2x1x16xf32>
    %52 = vector.shape_cast %51 : vector<2x1x16xf32> to vector<2x16xf32>
    %cst_37 = arith.constant dense<0.000000e+00> : vector<2x32xf32>
    %53 = tpu.matmul %52, %0, %cst_37 {dimension_numbers = #tpu.dot_dimension_numbers<[1], [0], [0], [1], [0, 0, 1, 1], [], []>} : vector<2x16xf32>, vector<16x32xf32>, vector<2x32xf32> -> vector<2x32xf32>
    %54 = arith.addf %53, %4 : vector<2x32xf32>
    %cst_38 = arith.constant dense<0.000000e+00> : vector<2x32xf32>
    %55 = tpu.matmul %49, %1, %cst_38 {dimension_numbers = #tpu.dot_dimension_numbers<[1], [0], [0], [1], [0, 0, 1, 1], [], []>} : vector<2x32xf32>, vector<32x32xf32>, vector<2x32xf32> -> vector<2x32xf32>
    %56 = arith.addf %54, %55 : vector<2x32xf32>
    %57 = math.tanh %56 : vector<2x32xf32>
    %c0_39 = arith.constant 0 : index
    %c192 = arith.constant 192 : index
    %58 = vector.load %arg5[%c0_39, %c192] : memref<2x256xf32, #tpu.memory_space<vmem>>, vector<2x32xf32>
    tpu.vector_store %arg5[%c0_39, %c192], %57 {strides = array<i32>} : memref<2x256xf32, #tpu.memory_space<vmem>>, vector<2x32xf32>,
    %c0_40 = arith.constant 0 : index
    %c7 = arith.constant 7 : index
    %c0_41 = arith.constant 0 : index
    %59 = vector.load %arg1[%c0_40, %c7, %c0_41] : memref<2x8x16xf32, #tpu.memory_space<vmem>>, vector<2x1x16xf32>
    %60 = vector.shape_cast %59 : vector<2x1x16xf32> to vector<2x16xf32>
    %cst_42 = arith.constant dense<0.000000e+00> : vector<2x32xf32>
    %61 = tpu.matmul %60, %0, %cst_42 {dimension_numbers = #tpu.dot_dimension_numbers<[1], [0], [0], [1], [0, 0, 1, 1], [], []>} : vector<2x16xf32>, vector<16x32xf32>, vector<2x32xf32> -> vector<2x32xf32>
    %62 = arith.addf %61, %4 : vector<2x32xf32>
    %cst_43 = arith.constant dense<0.000000e+00> : vector<2x32xf32>
    %63 = tpu.matmul %57, %1, %cst_43 {dimension_numbers = #tpu.dot_dimension_numbers<[1], [0], [0], [1], [0, 0, 1, 1], [], []>} : vector<2x32xf32>, vector<32x32xf32>, vector<2x32xf32> -> vector<2x32xf32>
    %64 = arith.addf %62, %63 : vector<2x32xf32>
    %65 = math.tanh %64 : vector<2x32xf32>
    %c0_44 = arith.constant 0 : index
    %c224 = arith.constant 224 : index
    %66 = vector.load %arg5[%c0_44, %c224] : memref<2x256xf32, #tpu.memory_space<vmem>>, vector<2x32xf32>
    tpu.vector_store %arg5[%c0_44, %c224], %65 {strides = array<i32>} : memref<2x256xf32, #tpu.memory_space<vmem>>, vector<2x32xf32>,
    return
  }
  func.func @transform_0(%arg0: i32) -> (i32, i32, i32) {
    %c0_i32 = arith.constant 0 : i32
    %c0_i32_0 = arith.constant 0 : i32
    %c0_i32_1 = arith.constant 0 : i32
    return %arg0, %c0_i32, %c0_i32_0 : i32, i32, i32
  }
  func.func @transform_1(%arg0: i32) -> (i32, i32) {
    %c0_i32 = arith.constant 0 : i32
    %c0_i32_0 = arith.constant 0 : i32
    %c0_i32_1 = arith.constant 0 : i32
    return %c0_i32, %c0_i32_0 : i32, i32
  }
  func.func @transform_2(%arg0: i32) -> (i32, i32) {
    %c0_i32 = arith.constant 0 : i32
    %c0_i32_0 = arith.constant 0 : i32
    %c0_i32_1 = arith.constant 0 : i32
    return %c0_i32, %c0_i32_0 : i32, i32
  }
  func.func @transform_3(%arg0: i32) -> (i32, i32) {
    %c0_i32 = arith.constant 0 : i32
    %c0_i32_0 = arith.constant 0 : i32
    %c0_i32_1 = arith.constant 0 : i32
    return %c0_i32, %c0_i32_0 : i32, i32
  }
  func.func @transform_4(%arg0: i32) -> (i32, i32) {
    %c0_i32 = arith.constant 0 : i32
    %c0_i32_0 = arith.constant 0 : i32
    return %arg0, %c0_i32 : i32, i32
  }
}

</mosaic_0001>

<llo_original>
// kernel: simple_rnn_encoder.1
$region0: #{simple_rnn_encoder.1}
  #allocation0 [shape = 'u32[]', space=smem, size = 0x4, offset = 0x4, fixed_abs, tag = 'smem constant byte address 0x4 - core index']
  #allocation1 [shape = 'u32[144,128]{1,0:T(1,128)}', space=vmem, size = 0x12000, scoped, tag = 'internal scratch']
  %s0 = inlined_call_operand.hbm [shape: f32[2,8,16], index: 0, kind: input, shape index: {}]
  %s1 = inlined_call_operand.hbm [shape: f32[16,32], index: 1, kind: input, shape index: {}]
  %s2 = inlined_call_operand.hbm [shape: f32[32,32], index: 2, kind: input, shape index: {}]
  %s3 = inlined_call_operand.vmem [shape: f32[1,32], index: 3, kind: input, shape index: {}]
  %s4 = inlined_call_operand.vmem [shape: f32[2,256], index: 4, kind: output, shape index: {}]
  %s5 = sld [smem:[#allocation0]]
  $region38: #{simple_rnn_encoder.1} parent=0
    _
  %s7 = ssub.s32 1, %s5
  %s8 = scalar_select 0, %s7, %s5
  $region1: #{simple_rnn_encoder.1} parent=0
    #allocation2 [shape = 'u8[8192]{0}', space=vmem, size = 0x2000, scoped, tag = 'input window, operand 0, single buffered']
    #allocation3 [shape = 's32[1]{0}', space=sflag, size = 0x4, scoped, tag = 'scoped memory for simple_rnn_encoder.1']
    #allocation4 [shape = 'u8[8192]{0}', space=vmem, size = 0x2000, scoped, tag = 'input window, operand 1, single buffered']
    #allocation5 [shape = 's32[1]{0}', space=sflag, size = 0x4, scoped, tag = 'scoped memory for simple_rnn_encoder.1']
    #allocation6 [shape = 'u8[16384]{0}', space=vmem, size = 0x4000, scoped, tag = 'input window, operand 2, single buffered']
    %9 = vsyncpa [#allocation3], 0
    %10 = vsyncpa [#allocation5], 0
    // Predicated region
    $region2: #{simple_rnn_encoder.1} parent=1 // pred_check
      _
    $region3: #{simple_rnn_encoder.1} parent=1 // pred_check_branch
      %12 = sbr.rel (0) target = $region5
    $region4: #{simple_rnn_encoder.1} parent=1 // pred_region
      %s14 = ssub.s32 256, 256
      %15 = vsyncadd [#allocation3], %s14
      %s16 = sshll.u32 [#allocation2], 4
      %s17 = int_to_ptr.vmem [resolvable:$true] %s16
      %22 = dma.hbm_to_vmem [thread:$0]  %s0, 256, %s17, [#allocation3], 128, 128, 8
    $region5: #{simple_rnn_encoder.1} parent=1 // pred_fallthru
      _
    // Predicated region
    $region6: #{simple_rnn_encoder.1} parent=1 // pred_check
      _
    $region7: #{simple_rnn_encoder.1} parent=1 // pred_check_branch
      %24 = sbr.rel (0) target = $region9
    $region8: #{simple_rnn_encoder.1} parent=1 // pred_region
      %s26 = ssub.s32 256, 256
      %27 = vsyncadd [#allocation5], %s26
      %s28 = sshll.u32 [#allocation4], 4
      %s29 = int_to_ptr.vmem [resolvable:$true] %s28
      %34 = dma.hbm_to_vmem [thread:$0]  %s1, 256, %s29, [#allocation5], 128, 128, 8
    $region9: #{simple_rnn_encoder.1} parent=1 // pred_fallthru
      _
    // Predicated region
    $region10: #{simple_rnn_encoder.1} parent=1 // pred_check
      _
    $region11: #{simple_rnn_encoder.1} parent=1 // pred_check_branch
      %36 = sbr.rel (0) target = $region13
    $region12: #{simple_rnn_encoder.1} parent=1 // pred_region
      %s38 = ssub.s32 512, 512
      %39 = vsyncadd [#allocation5], %s38
      %s40 = sshll.u32 [#allocation6], 4
      %s41 = int_to_ptr.vmem [resolvable:$true] %s40
      %46 = dma.hbm_to_vmem [thread:$0]  %s2, 512, %s41, [#allocation5], 128, 128, 8
    $region13: #{simple_rnn_encoder.1} parent=1 // pred_fallthru
      _
    // Predicated region
    $region14: #{simple_rnn_encoder.1} parent=1 // pred_check
      _
    $region15: #{simple_rnn_encoder.1} parent=1 // pred_check_branch
      %48 = sbr.rel (0) target = $region17
    $region16: #{simple_rnn_encoder.1} parent=1 // pred_region
      _
    $region17: #{simple_rnn_encoder.1} parent=1 // pred_fallthru
      _
    // Predicated region
    $region18: #{simple_rnn_encoder.1} parent=1 // pred_check
      _
    $region19: #{simple_rnn_encoder.1} parent=1 // pred_check_branch
      %50 = sbr.rel (0) target = $region21
    $region20: #{simple_rnn_encoder.1} parent=1 // pred_region
      %51 = dma.done [#allocation3], 256
    $region21: #{simple_rnn_encoder.1} parent=1 // pred_fallthru
      _
    // Predicated region
    $region22: #{simple_rnn_encoder.1} parent=1 // pred_check
      _
    $region23: #{simple_rnn_encoder.1} parent=1 // pred_check_branch
      %53 = sbr.rel (0) target = $region25
    $region24: #{simple_rnn_encoder.1} parent=1 // pred_region
      %54 = dma.done [#allocation5], 256
    $region25: #{simple_rnn_encoder.1} parent=1 // pred_fallthru
      _
    // Predicated region
    $region26: #{simple_rnn_encoder.1} parent=1 // pred_check
      _
    $region27: #{simple_rnn_encoder.1} parent=1 // pred_check_branch
      %56 = sbr.rel (0) target = $region29
    $region28: #{simple_rnn_encoder.1} parent=1 // pred_region
      %57 = dma.done [#allocation5], 512
    $region29: #{simple_rnn_encoder.1} parent=1 // pred_fallthru
      _
    %v58 = vld [vmem:[#allocation4] sm:$0xff]
    %v59 = vld [vmem:[#allocation4 + $0x8] sm:$0xff]
    %v60 = vld [vmem:[#allocation6] sm:$0xff]
    %v61 = vld [vmem:[#allocation6 + $0x8] sm:$0xff]
    %v62 = vld [vmem:[#allocation6 + $0x10] sm:$0xff]
    %v63 = vld [vmem:[#allocation6 + $0x18] sm:$0xff]
    %v64 = vld [vmem:[%s3] sm:$0x1]
    %v66 = vlaneseq
    %v67 = vshrl.u32 %v66, 7
    %v68 = vsub.s32 0, %v67
    %v69 = vrot.slane %v64, %v68
    %v71 = vld [vmem:[#allocation2] sm:$0x1]
    %v72 = vld [vmem:[#allocation2 + $0x8] sm:$0x1]
    %v75 = vrot.slane %v72, 7
    %vm76 = vcmask 1041409
    %v77 = vsel %vm76, %v75, %v71
    %vm78 = vcmask 130048
    %v79 = vsel %vm78, %v77, 0
    %81 = vmatprep.subr.mxu0 0.0
    %82 = vmatpush1.msra.mxu0 %v58
    %83 = vmatprep.subr.mxu0 0.0
    %84 = vmatpush1.msra.mxu0 %v59
    %85 = vmatprep.subr.mxu0 0.0
    %86 = vmatpush1.msra.mxu0 0.0
    %87 = vmatprep.subr.mxu0 0.0
    %88 = vmatpush1.msra.mxu0 0.0
    %89 = vmatprep.subr.mxu0 0.0
    %90 = vmatpush1.msra.mxu0 0.0
    %91 = vmatprep.subr.mxu0 0.0
    %92 = vmatpush1.msra.mxu0 0.0
    %93 = vmatprep.subr.mxu0 0.0
    %94 = vmatpush1.msra.mxu0 0.0
    %95 = vmatprep.subr.mxu0 0.0
    %96 = vmatpush1.msra.mxu0 0.0
    %97 = vmatprep.subr.mxu0 0.0
    %98 = vmatpush1.msra.mxu0 0.0
    %99 = vmatprep.subr.mxu0 0.0
    %100 = vmatpush1.msra.mxu0 0.0
    %101 = vmatprep.subr.mxu0 0.0
    %102 = vmatpush1.msra.mxu0 0.0
    %103 = vmatprep.subr.mxu0 0.0
    %104 = vmatpush1.msra.mxu0 0.0
    %105 = vmatprep.subr.mxu0 0.0
    %106 = vmatpush1.msra.mxu0 0.0
    %107 = vmatprep.subr.mxu0 0.0
    %108 = vmatpush1.msra.mxu0 0.0
    %109 = vmatprep.subr.mxu0 0.0
    %110 = vmatpush1.msra.mxu0 0.0
    %111 = vmatprep.subr.mxu0 0.0
    %112 = vmatpush1.msra.mxu0 0.0
    %113 = vmatprep.subr.mxu0 0.0
    %114 = vmatpush1.msra.mxu0 0.0
    %115 = vmatprep.subr.mxu0 0.0
    %116 = vmatpush1.msra.mxu0 0.0
    %117 = vmatprep.subr.mxu0 0.0
    %118 = vmatpush1.msra.mxu0 0.0
    %119 = vmatprep.subr.mxu0 0.0
    %120 = vmatpush1.msra.mxu0 0.0
    %121 = vmatprep.subr.mxu0 0.0
    %122 = vmatpush1.msra.mxu0 0.0
    %123 = vmatprep.subr.mxu0 0.0
    %124 = vmatpush1.msra.mxu0 0.0
    %125 = vmatprep.subr.mxu0 0.0
    %126 = vmatpush1.msra.mxu0 0.0
    %127 = vmatprep.subr.mxu0 0.0
    %128 = vmatpush1.msra.mxu0 0.0
    %129 = vmatprep.subr.mxu0 0.0
    %130 = vmatpush1.msra.mxu0 0.0
    %131 = vmatprep.subr.mxu0 0.0
    %132 = vmatpush1.msra.mxu0 0.0
    %133 = vmatprep.subr.mxu0 0.0
    %134 = vmatpush1.msra.mxu0 0.0
    %135 = vmatprep.subr.mxu0 0.0
    %136 = vmatpush1.msra.mxu0 0.0
    %137 = vmatprep.subr.mxu0 0.0
    %138 = vmatpush1.msra.mxu0 0.0
    %139 = vmatprep.subr.mxu0 0.0
    %140 = vmatpush1.msra.mxu0 0.0
    %141 = vmatprep.subr.mxu0 0.0
    %142 = vmatpush1.msra.mxu0 0.0
    %143 = vmatprep.subr.mxu0 0.0
    %144 = vmatpush1.msra.mxu0 0.0
    %145 = vmatprep.mubr.f32.mxu0 0.0
    %146 = vmatmul.mubr.f32.gmra.mrb[0].mxu0 %v79
    %v147 = vpop.f32.mrb[0].mxu0
    %v148 = vadd.f32 %v69, %v147
    %v149 = vpop.f32.mrb[0].mxu0
    %150 = vdwg.mxu0
    %v151 = vtanh.pop %v148
    %vm152 = vcmask 254976
    %153 = vst.msk [vmem:[%s4] sm:$0x3] %vm152, %v151
    %v154 = vld [vmem:[#allocation2 + $0x1] sm:$0x1]
    %v155 = vld [vmem:[#allocation2 + $0x9] sm:$0x1]
    %v158 = vrot.slane %v155, 7
    %v159 = vsel %vm76, %v158, %v154
    %v160 = vsel %vm78, %v159, 0
    %162 = vmatprep.subr.mxu0 0.0
    %163 = vmatpush1.msra.mxu0 %v58
    %164 = vmatprep.subr.mxu0 0.0
    %165 = vmatpush1.msra.mxu0 %v59
    %166 = vmatprep.subr.mxu0 0.0
    %167 = vmatpush1.msra.mxu0 0.0
    %168 = vmatprep.subr.mxu0 0.0
    %169 = vmatpush1.msra.mxu0 0.0
    %170 = vmatprep.subr.mxu0 0.0
    %171 = vmatpush1.msra.mxu0 0.0
    %172 = vmatprep.subr.mxu0 0.0
    %173 = vmatpush1.msra.mxu0 0.0
    %174 = vmatprep.subr.mxu0 0.0
    %175 = vmatpush1.msra.mxu0 0.0
    %176 = vmatprep.subr.mxu0 0.0
    %177 = vmatpush1.msra.mxu0 0.0
    %178 = vmatprep.subr.mxu0 0.0
    %179 = vmatpush1.msra.mxu0 0.0
    %180 = vmatprep.subr.mxu0 0.0
    %181 = vmatpush1.msra.mxu0 0.0
    %182 = vmatprep.subr.mxu0 0.0
    %183 = vmatpush1.msra.mxu0 0.0
    %184 = vmatprep.subr.mxu0 0.0
    %185 = vmatpush1.msra.mxu0 0.0
    %186 = vmatprep.subr.mxu0 0.0
    %187 = vmatpush1.msra.mxu0 0.0
    %188 = vmatprep.subr.mxu0 0.0
    %189 = vmatpush1.msra.mxu0 0.0
    %190 = vmatprep.subr.mxu0 0.0
    %191 = vmatpush1.msra.mxu0 0.0
    %192 = vmatprep.subr.mxu0 0.0
    %193 = vmatpush1.msra.mxu0 0.0
    %194 = vmatprep.subr.mxu0 0.0
    %195 = vmatpush1.msra.mxu0 0.0
    %196 = vmatprep.subr.mxu0 0.0
    %197 = vmatpush1.msra.mxu0 0.0
    %198 = vmatprep.subr.mxu0 0.0
    %199 = vmatpush1.msra.mxu0 0.0
    %200 = vmatprep.subr.mxu0 0.0
    %201 = vmatpush1.msra.mxu0 0.0
    %202 = vmatprep.subr.mxu0 0.0
    %203 = vmatpush1.msra.mxu0 0.0
    %204 = vmatprep.subr.mxu0 0.0
    %205 = vmatpush1.msra.mxu0 0.0
    %206 = vmatprep.subr.mxu0 0.0
    %207 = vmatpush1.msra.mxu0 0.0
    %208 = vmatprep.subr.mxu0 0.0
    %209 = vmatpush1.msra.mxu0 0.0
    %210 = vmatprep.subr.mxu0 0.0
    %211 = vmatpush1.msra.mxu0 0.0
    %212 = vmatprep.subr.mxu0 0.0
    %213 = vmatpush1.msra.mxu0 0.0
    %214 = vmatprep.subr.mxu0 0.0
    %215 = vmatpush1.msra.mxu0 0.0
    %216 = vmatprep.subr.mxu0 0.0
    %217 = vmatpush1.msra.mxu0 0.0
    %218 = vmatprep.subr.mxu0 0.0
    %219 = vmatpush1.msra.mxu0 0.0
    %220 = vmatprep.subr.mxu0 0.0
    %221 = vmatpush1.msra.mxu0 0.0
    %222 = vmatprep.subr.mxu0 0.0
    %223 = vmatpush1.msra.mxu0 0.0
    %224 = vmatprep.subr.mxu0 0.0
    %225 = vmatpush1.msra.mxu0 0.0
    %226 = vmatprep.mubr.f32.mxu0 0.0
    %227 = vmatmul.mubr.f32.gmra.mrb[0].mxu0 %v160
    %v228 = vpop.f32.mrb[0].mxu0
    %v229 = vadd.f32 %v69, %v228
    %v230 = vpop.f32.mrb[0].mxu0
    %231 = vdwg.mxu0
    %vm232 = vcmask 261120
    %v234 = vsel %vm232, %v151, 0
    %236 = vmatprep.subr.mxu0 0.0
    %237 = vmatpush1.msra.mxu0 %v60
    %238 = vmatprep.subr.mxu0 0.0
    %239 = vmatpush1.msra.mxu0 %v61
    %240 = vmatprep.subr.mxu0 0.0
    %241 = vmatpush1.msra.mxu0 %v62
    %242 = vmatprep.subr.mxu0 0.0
    %243 = vmatpush1.msra.mxu0 %v63
    %244 = vmatprep.subr.mxu0 0.0
    %245 = vmatpush1.msra.mxu0 0.0
    %246 = vmatprep.subr.mxu0 0.0
    %247 = vmatpush1.msra.mxu0 0.0
    %248 = vmatprep.subr.mxu0 0.0
    %249 = vmatpush1.msra.mxu0 0.0
    %250 = vmatprep.subr.mxu0 0.0
    %251 = vmatpush1.msra.mxu0 0.0
    %252 = vmatprep.subr.mxu0 0.0
    %253 = vmatpush1.msra.mxu0 0.0
    %254 = vmatprep.subr.mxu0 0.0
    %255 = vmatpush1.msra.mxu0 0.0
    %256 = vmatprep.subr.mxu0 0.0
    %257 = vmatpush1.msra.mxu0 0.0
    %258 = vmatprep.subr.mxu0 0.0
    %259 = vmatpush1.msra.mxu0 0.0
    %260 = vmatprep.subr.mxu0 0.0
    %261 = vmatpush1.msra.mxu0 0.0
    %262 = vmatprep.subr.mxu0 0.0
    %263 = vmatpush1.msra.mxu0 0.0
    %264 = vmatprep.subr.mxu0 0.0
    %265 = vmatpush1.msra.mxu0 0.0
    %266 = vmatprep.subr.mxu0 0.0
    %267 = vmatpush1.msra.mxu0 0.0
    %268 = vmatprep.subr.mxu0 0.0
    %269 = vmatpush1.msra.mxu0 0.0
    %270 = vmatprep.subr.mxu0 0.0
    %271 = vmatpush1.msra.mxu0 0.0
    %272 = vmatprep.subr.mxu0 0.0
    %273 = vmatpush1.msra.mxu0 0.0
    %274 = vmatprep.subr.mxu0 0.0
    %275 = vmatpush1.msra.mxu0 0.0
    %276 = vmatprep.subr.mxu0 0.0
    %277 = vmatpush1.msra.mxu0 0.0
    %278 = vmatprep.subr.mxu0 0.0
    %279 = vmatpush1.msra.mxu0 0.0
    %280 = vmatprep.subr.mxu0 0.0
    %281 = vmatpush1.msra.mxu0 0.0
    %282 = vmatprep.subr.mxu0 0.0
    %283 = vmatpush1.msra.mxu0 0.0
    %284 = vmatprep.subr.mxu0 0.0
    %285 = vmatpush1.msra.mxu0 0.0
    %286 = vmatprep.subr.mxu0 0.0
    %287 = vmatpush1.msra.mxu0 0.0
    %288 = vmatprep.subr.mxu0 0.0
    %289 = vmatpush1.msra.mxu0 0.0
    %290 = vmatprep.subr.mxu0 0.0
    %291 = vmatpush1.msra.mxu0 0.0
    %292 = vmatprep.subr.mxu0 0.0
    %293 = vmatpush1.msra.mxu0 0.0
    %294 = vmatprep.subr.mxu0 0.0
    %295 = vmatpush1.msra.mxu0 0.0
    %296 = vmatprep.subr.mxu0 0.0
    %297 = vmatpush1.msra.mxu0 0.0
    %298 = vmatprep.subr.mxu0 0.0
    %299 = vmatpush1.msra.mxu0 0.0
    %300 = vmatprep.mubr.f32.mxu0 0.0
    %301 = vmatmul.mubr.f32.gmra.mrb[0].mxu0 %v234
    %v302 = vpop.f32.mrb[0].mxu0
    %v303 = vadd.f32 0.0, %v302
    %v304 = vpop.f32.mrb[0].mxu0
    %305 = vdwg.mxu0
    %v306 = vadd.f32 %v229, %v303
    %v307 = vtanh.pop %v306
    %v310 = vunpack.c.l.s4 1983009808
    %v311 = vunpack.c.0.s8 %v310
    %v312 = vlaneseq
    %v313 = vshrl.u32 %v312, 7
    %v314 = vsub.s32 %v311, %v313
    %v315 = vrot.slane %v307, %v314
    %316 = vrot.lane.b32.xlu0 %v315, 32
    %v317 = vpop.permute.xlu0 %316
    %vm319 = vcmask 517376
    %320 = vst.msk [vmem:[%s4] sm:$0x3] %vm319, %v317
    %v321 = vld [vmem:[#allocation2 + $0x2] sm:$0x1]
    %v322 = vld [vmem:[#allocation2 + $0xa] sm:$0x1]
    %v325 = vrot.slane %v322, 7
    %v326 = vsel %vm76, %v325, %v321
    %v327 = vsel %vm78, %v326, 0
    %329 = vmatprep.subr.mxu0 0.0
    %330 = vmatpush1.msra.mxu0 %v58
    %331 = vmatprep.subr.mxu0 0.0
    %332 = vmatpush1.msra.mxu0 %v59
    %333 = vmatprep.subr.mxu0 0.0
    %334 = vmatpush1.msra.mxu0 0.0
    %335 = vmatprep.subr.mxu0 0.0
    %336 = vmatpush1.msra.mxu0 0.0
    %337 = vmatprep.subr.mxu0 0.0
    %338 = vmatpush1.msra.mxu0 0.0
    %339 = vmatprep.subr.mxu0 0.0
    %340 = vmatpush1.msra.mxu0 0.0
    %341 = vmatprep.subr.mxu0 0.0
    %342 = vmatpush1.msra.mxu0 0.0
    %343 = vmatprep.subr.mxu0 0.0
    %344 = vmatpush1.msra.mxu0 0.0
    %345 = vmatprep.subr.mxu0 0.0
    %346 = vmatpush1.msra.mxu0 0.0
    %347 = vmatprep.subr.mxu0 0.0
    %348 = vmatpush1.msra.mxu0 0.0
    %349 = vmatprep.subr.mxu0 0.0
    %350 = vmatpush1.msra.mxu0 0.0
    %351 = vmatprep.subr.mxu0 0.0
    %352 = vmatpush1.msra.mxu0 0.0
    %353 = vmatprep.subr.mxu0 0.0
    %354 = vmatpush1.msra.mxu0 0.0
    %355 = vmatprep.subr.mxu0 0.0
    %356 = vmatpush1.msra.mxu0 0.0
    %357 = vmatprep.subr.mxu0 0.0
    %358 = vmatpush1.msra.mxu0 0.0
    %359 = vmatprep.subr.mxu0 0.0
    %360 = vmatpush1.msra.mxu0 0.0
    %361 = vmatprep.subr.mxu0 0.0
    %362 = vmatpush1.msra.mxu0 0.0
    %363 = vmatprep.subr.mxu0 0.0
    %364 = vmatpush1.msra.mxu0 0.0
    %365 = vmatprep.subr.mxu0 0.0
    %366 = vmatpush1.msra.mxu0 0.0
    %367 = vmatprep.subr.mxu0 0.0
    %368 = vmatpush1.msra.mxu0 0.0
    %369 = vmatprep.subr.mxu0 0.0
    %370 = vmatpush1.msra.mxu0 0.0
    %371 = vmatprep.subr.mxu0 0.0
    %372 = vmatpush1.msra.mxu0 0.0
    %373 = vmatprep.subr.mxu0 0.0
    %374 = vmatpush1.msra.mxu0 0.0
    %375 = vmatprep.subr.mxu0 0.0
    %376 = vmatpush1.msra.mxu0 0.0
    %377 = vmatprep.subr.mxu0 0.0
    %378 = vmatpush1.msra.mxu0 0.0
    %379 = vmatprep.subr.mxu0 0.0
    %380 = vmatpush1.msra.mxu0 0.0
    %381 = vmatprep.subr.mxu0 0.0
    %382 = vmatpush1.msra.mxu0 0.0
    %383 = vmatprep.subr.mxu0 0.0
    %384 = vmatpush1.msra.mxu0 0.0
    %385 = vmatprep.subr.mxu0 0.0
    %386 = vmatpush1.msra.mxu0 0.0
    %387 = vmatprep.subr.mxu0 0.0
    %388 = vmatpush1.msra.mxu0 0.0
    %389 = vmatprep.subr.mxu0 0.0
    %390 = vmatpush1.msra.mxu0 0.0
    %391 = vmatprep.subr.mxu0 0.0
    %392 = vmatpush1.msra.mxu0 0.0
    %393 = vmatprep.mubr.f32.mxu0 0.0
    %394 = vmatmul.mubr.f32.gmra.mrb[0].mxu0 %v327
    %v395 = vpop.f32.mrb[0].mxu0
    %v396 = vadd.f32 %v69, %v395
    %v397 = vpop.f32.mrb[0].mxu0
    %398 = vdwg.mxu0
    %v399 = vsel %vm232, %v307, 0
    %401 = vmatprep.subr.mxu0 0.0
    %402 = vmatpush1.msra.mxu0 %v60
    %403 = vmatprep.subr.mxu0 0.0
    %404 = vmatpush1.msra.mxu0 %v61
    %405 = vmatprep.subr.mxu0 0.0
    %406 = vmatpush1.msra.mxu0 %v62
    %407 = vmatprep.subr.mxu0 0.0
    %408 = vmatpush1.msra.mxu0 %v63
    %409 = vmatprep.subr.mxu0 0.0
    %410 = vmatpush1.msra.mxu0 0.0
    %411 = vmatprep.subr.mxu0 0.0
    %412 = vmatpush1.msra.mxu0 0.0
    %413 = vmatprep.subr.mxu0 0.0
    %414 = vmatpush1.msra.mxu0 0.0
    %415 = vmatprep.subr.mxu0 0.0
    %416 = vmatpush1.msra.mxu0 0.0
    %417 = vmatprep.subr.mxu0 0.0
    %418 = vmatpush1.msra.mxu0 0.0
    %419 = vmatprep.subr.mxu0 0.0
    %420 = vmatpush1.msra.mxu0 0.0
    %421 = vmatprep.subr.mxu0 0.0
    %422 = vmatpush1.msra.mxu0 0.0
    %423 = vmatprep.subr.mxu0 0.0
    %424 = vmatpush1.msra.mxu0 0.0
    %425 = vmatprep.subr.mxu0 0.0
    %426 = vmatpush1.msra.mxu0 0.0
    %427 = vmatprep.subr.mxu0 0.0
    %428 = vmatpush1.msra.mxu0 0.0
    %429 = vmatprep.subr.mxu0 0.0
    %430 = vmatpush1.msra.mxu0 0.0
    %431 = vmatprep.subr.mxu0 0.0
    %432 = vmatpush1.msra.mxu0 0.0
    %433 = vmatprep.subr.mxu0 0.0
    %434 = vmatpush1.msra.mxu0 0.0
    %435 = vmatprep.subr.mxu0 0.0
    %436 = vmatpush1.msra.mxu0 0.0
    %437 = vmatprep.subr.mxu0 0.0
    %438 = vmatpush1.msra.mxu0 0.0
    %439 = vmatprep.subr.mxu0 0.0
    %440 = vmatpush1.msra.mxu0 0.0
    %441 = vmatprep.subr.mxu0 0.0
    %442 = vmatpush1.msra.mxu0 0.0
    %443 = vmatprep.subr.mxu0 0.0
    %444 = vmatpush1.msra.mxu0 0.0
    %445 = vmatprep.subr.mxu0 0.0
    %446 = vmatpush1.msra.mxu0 0.0
    %447 = vmatprep.subr.mxu0 0.0
    %448 = vmatpush1.msra.mxu0 0.0
    %449 = vmatprep.subr.mxu0 0.0
    %450 = vmatpush1.msra.mxu0 0.0
    %451 = vmatprep.subr.mxu0 0.0
    %452 = vmatpush1.msra.mxu0 0.0
    %453 = vmatprep.subr.mxu0 0.0
    %454 = vmatpush1.msra.mxu0 0.0
    %455 = vmatprep.subr.mxu0 0.0
    %456 = vmatpush1.msra.mxu0 0.0
    %457 = vmatprep.subr.mxu0 0.0
    %458 = vmatpush1.msra.mxu0 0.0
    %459 = vmatprep.subr.mxu0 0.0
    %460 = vmatpush1.msra.mxu0 0.0
    %461 = vmatprep.subr.mxu0 0.0
    %462 = vmatpush1.msra.mxu0 0.0
    %463 = vmatprep.subr.mxu0 0.0
    %464 = vmatpush1.msra.mxu0 0.0
    %465 = vmatprep.mubr.f32.mxu0 0.0
    %466 = vmatmul.mubr.f32.gmra.mrb[0].mxu0 %v399
    %v467 = vpop.f32.mrb[0].mxu0
    %v468 = vadd.f32 0.0, %v467
    %v469 = vpop.f32.mrb[0].mxu0
    %470 = vdwg.mxu0
    %v471 = vadd.f32 %v396, %v468
    %v472 = vtanh.pop %v471
    %v475 = vunpack.c.l.s4 1983009808
    %v476 = vunpack.c.0.s8 %v475
    %v477 = vlaneseq
    %v478 = vshrl.u32 %v477, 7
    %v479 = vsub.s32 %v476, %v478
    %v480 = vrot.slane %v472, %v479
    %481 = vrot.lane.b32.xlu0 %v480, 64
    %v482 = vpop.permute.xlu0 %481
    %vm484 = vcmask 779776
    %485 = vst.msk [vmem:[%s4] sm:$0x3] %vm484, %v482
    %v486 = vld [vmem:[#allocation2 + $0x3] sm:$0x1]
    %v487 = vld [vmem:[#allocation2 + $0xb] sm:$0x1]
    %v490 = vrot.slane %v487, 7
    %v491 = vsel %vm76, %v490, %v486
    %v492 = vsel %vm78, %v491, 0
    %494 = vmatprep.subr.mxu0 0.0
    %495 = vmatpush1.msra.mxu0 %v58
    %496 = vmatprep.subr.mxu0 0.0
    %497 = vmatpush1.msra.mxu0 %v59
    %498 = vmatprep.subr.mxu0 0.0
    %499 = vmatpush1.msra.mxu0 0.0
    %500 = vmatprep.subr.mxu0 0.0
    %501 = vmatpush1.msra.mxu0 0.0
    %502 = vmatprep.subr.mxu0 0.0
    %503 = vmatpush1.msra.mxu0 0.0
    %504 = vmatprep.subr.mxu0 0.0
    %505 = vmatpush1.msra.mxu0 0.0
    %506 = vmatprep.subr.mxu0 0.0
    %507 = vmatpush1.msra.mxu0 0.0
    %508 = vmatprep.subr.mxu0 0.0
    %509 = vmatpush1.msra.mxu0 0.0
    %510 = vmatprep.subr.mxu0 0.0
    %511 = vmatpush1.msra.mxu0 0.0
    %512 = vmatprep.subr.mxu0 0.0
    %513 = vmatpush1.msra.mxu0 0.0
    %514 = vmatprep.subr.mxu0 0.0
    %515 = vmatpush1.msra.mxu0 0.0
    %516 = vmatprep.subr.mxu0 0.0
    %517 = vmatpush1.msra.mxu0 0.0
    %518 = vmatprep.subr.mxu0 0.0
    %519 = vmatpush1.msra.mxu0 0.0
    %520 = vmatprep.subr.mxu0 0.0
    %521 = vmatpush1.msra.mxu0 0.0
    %522 = vmatprep.subr.mxu0 0.0
    %523 = vmatpush1.msra.mxu0 0.0
    %524 = vmatprep.subr.mxu0 0.0
    %525 = vmatpush1.msra.mxu0 0.0
    %526 = vmatprep.subr.mxu0 0.0
    %527 = vmatpush1.msra.mxu0 0.0
    %528 = vmatprep.subr.mxu0 0.0
    %529 = vmatpush1.msra.mxu0 0.0
    %530 = vmatprep.subr.mxu0 0.0
    %531 = vmatpush1.msra.mxu0 0.0
    %532 = vmatprep.subr.mxu0 0.0
    %533 = vmatpush1.msra.mxu0 0.0
    %534 = vmatprep.subr.mxu0 0.0
    %535 = vmatpush1.msra.mxu0 0.0
    %536 = vmatprep.subr.mxu0 0.0
    %537 = vmatpush1.msra.mxu0 0.0
    %538 = vmatprep.subr.mxu0 0.0
    %539 = vmatpush1.msra.mxu0 0.0
    %540 = vmatprep.subr.mxu0 0.0
    %541 = vmatpush1.msra.mxu0 0.0
    %542 = vmatprep.subr.mxu0 0.0
    %543 = vmatpush1.msra.mxu0 0.0
    %544 = vmatprep.subr.mxu0 0.0
    %545 = vmatpush1.msra.mxu0 0.0
    %546 = vmatprep.subr.mxu0 0.0
    %547 = vmatpush1.msra.mxu0 0.0
    %548 = vmatprep.subr.mxu0 0.0
    %549 = vmatpush1.msra.mxu0 0.0
    %550 = vmatprep.subr.mxu0 0.0
    %551 = vmatpush1.msra.mxu0 0.0
    %552 = vmatprep.subr.mxu0 0.0
    %553 = vmatpush1.msra.mxu0 0.0
    %554 = vmatprep.subr.mxu0 0.0
    %555 = vmatpush1.msra.mxu0 0.0
    %556 = vmatprep.subr.mxu0 0.0
    %557 = vmatpush1.msra.mxu0 0.0
    %558 = vmatprep.mubr.f32.mxu0 0.0
    %559 = vmatmul.mubr.f32.gmra.mrb[0].mxu0 %v492
    %v560 = vpop.f32.mrb[0].mxu0
    %v561 = vadd.f32 %v69, %v560
    %v562 = vpop.f32.mrb[0].mxu0
    %563 = vdwg.mxu0
    %v564 = vsel %vm232, %v472, 0
    %566 = vmatprep.subr.mxu0 0.0
    %567 = vmatpush1.msra.mxu0 %v60
    %568 = vmatprep.subr.mxu0 0.0
    %569 = vmatpush1.msra.mxu0 %v61
    %570 = vmatprep.subr.mxu0 0.0
    %571 = vmatpush1.msra.mxu0 %v62
    %572 = vmatprep.subr.mxu0 0.0
    %573 = vmatpush1.msra.mxu0 %v63
    %574 = vmatprep.subr.mxu0 0.0
    %575 = vmatpush1.msra.mxu0 0.0
    %576 = vmatprep.subr.mxu0 0.0
    %577 = vmatpush1.msra.mxu0 0.0
    %578 = vmatprep.subr.mxu0 0.0
    %579 = vmatpush1.msra.mxu0 0.0
    %580 = vmatprep.subr.mxu0 0.0
    %581 = vmatpush1.msra.mxu0 0.0
    %582 = vmatprep.subr.mxu0 0.0
    %583 = vmatpush1.msra.mxu0 0.0
    %584 = vmatprep.subr.mxu0 0.0
    %585 = vmatpush1.msra.mxu0 0.0
    %586 = vmatprep.subr.mxu0 0.0
    %587 = vmatpush1.msra.mxu0 0.0
    %588 = vmatprep.subr.mxu0 0.0
    %589 = vmatpush1.msra.mxu0 0.0
    %590 = vmatprep.subr.mxu0 0.0
    %591 = vmatpush1.msra.mxu0 0.0
    %592 = vmatprep.subr.mxu0 0.0
    %593 = vmatpush1.msra.mxu0 0.0
    %594 = vmatprep.subr.mxu0 0.0
    %595 = vmatpush1.msra.mxu0 0.0
    %596 = vmatprep.subr.mxu0 0.0
    %597 = vmatpush1.msra.mxu0 0.0
    %598 = vmatprep.subr.mxu0 0.0
    %599 = vmatpush1.msra.mxu0 0.0
    %600 = vmatprep.subr.mxu0 0.0
    %601 = vmatpush1.msra.mxu0 0.0
    %602 = vmatprep.subr.mxu0 0.0
    %603 = vmatpush1.msra.mxu0 0.0
    %604 = vmatprep.subr.mxu0 0.0
    %605 = vmatpush1.msra.mxu0 0.0
    %606 = vmatprep.subr.mxu0 0.0
    %607 = vmatpush1.msra.mxu0 0.0
    %608 = vmatprep.subr.mxu0 0.0
    %609 = vmatpush1.msra.mxu0 0.0
    %610 = vmatprep.subr.mxu0 0.0
    %611 = vmatpush1.msra.mxu0 0.0
    %612 = vmatprep.subr.mxu0 0.0
    %613 = vmatpush1.msra.mxu0 0.0
    %614 = vmatprep.subr.mxu0 0.0
    %615 = vmatpush1.msra.mxu0 0.0
    %616 = vmatprep.subr.mxu0 0.0
    %617 = vmatpush1.msra.mxu0 0.0
    %618 = vmatprep.subr.mxu0 0.0
    %619 = vmatpush1.msra.mxu0 0.0
    %620 = vmatprep.subr.mxu0 0.0
    %621 = vmatpush1.msra.mxu0 0.0
    %622 = vmatprep.subr.mxu0 0.0
    %623 = vmatpush1.msra.mxu0 0.0
    %624 = vmatprep.subr.mxu0 0.0
    %625 = vmatpush1.msra.mxu0 0.0
    %626 = vmatprep.subr.mxu0 0.0
    %627 = vmatpush1.msra.mxu0 0.0
    %628 = vmatprep.subr.mxu0 0.0
    %629 = vmatpush1.msra.mxu0 0.0
    %630 = vmatprep.mubr.f32.mxu0 0.0
    %631 = vmatmul.mubr.f32.gmra.mrb[0].mxu0 %v564
    %v632 = vpop.f32.mrb[0].mxu0
    %v633 = vadd.f32 0.0, %v632
    %v634 = vpop.f32.mrb[0].mxu0
    %635 = vdwg.mxu0
    %v636 = vadd.f32 %v561, %v633
    %v637 = vtanh.pop %v636
    %v640 = vunpack.c.l.s4 1983009808
    %v641 = vunpack.c.0.s8 %v640
    %v642 = vlaneseq
    %v643 = vshrl.u32 %v642, 7
    %v644 = vsub.s32 %v641, %v643
    %v645 = vrot.slane %v637, %v644
    %646 = vrot.lane.b32.xlu0 %v645, 96
    %v647 = vpop.permute.xlu0 %646
    %vm649 = vcmask 1042176
    %650 = vst.msk [vmem:[%s4] sm:$0x3] %vm649, %v647
    %v651 = vld [vmem:[#allocation2 + $0x4] sm:$0x1]
    %v652 = vld [vmem:[#allocation2 + $0xc] sm:$0x1]
    %v655 = vrot.slane %v652, 7
    %v656 = vsel %vm76, %v655, %v651
    %v657 = vsel %vm78, %v656, 0
    %659 = vmatprep.subr.mxu0 0.0
    %660 = vmatpush1.msra.mxu0 %v58
    %661 = vmatprep.subr.mxu0 0.0
    %662 = vmatpush1.msra.mxu0 %v59
    %663 = vmatprep.subr.mxu0 0.0
    %664 = vmatpush1.msra.mxu0 0.0
    %665 = vmatprep.subr.mxu0 0.0
    %666 = vmatpush1.msra.mxu0 0.0
    %667 = vmatprep.subr.mxu0 0.0
    %668 = vmatpush1.msra.mxu0 0.0
    %669 = vmatprep.subr.mxu0 0.0
    %670 = vmatpush1.msra.mxu0 0.0
    %671 = vmatprep.subr.mxu0 0.0
    %672 = vmatpush1.msra.mxu0 0.0
    %673 = vmatprep.subr.mxu0 0.0
    %674 = vmatpush1.msra.mxu0 0.0
    %675 = vmatprep.subr.mxu0 0.0
    %676 = vmatpush1.msra.mxu0 0.0
    %677 = vmatprep.subr.mxu0 0.0
    %678 = vmatpush1.msra.mxu0 0.0
    %679 = vmatprep.subr.mxu0 0.0
    %680 = vmatpush1.msra.mxu0 0.0
    %681 = vmatprep.subr.mxu0 0.0
    %682 = vmatpush1.msra.mxu0 0.0
    %683 = vmatprep.subr.mxu0 0.0
    %684 = vmatpush1.msra.mxu0 0.0
    %685 = vmatprep.subr.mxu0 0.0
    %686 = vmatpush1.msra.mxu0 0.0
    %687 = vmatprep.subr.mxu0 0.0
    %688 = vmatpush1.msra.mxu0 0.0
    %689 = vmatprep.subr.mxu0 0.0
    %690 = vmatpush1.msra.mxu0 0.0
    %691 = vmatprep.subr.mxu0 0.0
    %692 = vmatpush1.msra.mxu0 0.0
    %693 = vmatprep.subr.mxu0 0.0
    %694 = vmatpush1.msra.mxu0 0.0
    %695 = vmatprep.subr.mxu0 0.0
    %696 = vmatpush1.msra.mxu0 0.0
    %697 = vmatprep.subr.mxu0 0.0
    %698 = vmatpush1.msra.mxu0 0.0
    %699 = vmatprep.subr.mxu0 0.0
    %700 = vmatpush1.msra.mxu0 0.0
    %701 = vmatprep.subr.mxu0 0.0
    %702 = vmatpush1.msra.mxu0 0.0
    %703 = vmatprep.subr.mxu0 0.0
    %704 = vmatpush1.msra.mxu0 0.0
    %705 = vmatprep.subr.mxu0 0.0
    %706 = vmatpush1.msra.mxu0 0.0
    %707 = vmatprep.subr.mxu0 0.0
    %708 = vmatpush1.msra.mxu0 0.0
    %709 = vmatprep.subr.mxu0 0.0
    %710 = vmatpush1.msra.mxu0 0.0
    %711 = vmatprep.subr.mxu0 0.0
    %712 = vmatpush1.msra.mxu0 0.0
    %713 = vmatprep.subr.mxu0 0.0
    %714 = vmatpush1.msra.mxu0 0.0
    %715 = vmatprep.subr.mxu0 0.0
    %716 = vmatpush1.msra.mxu0 0.0
    %717 = vmatprep.subr.mxu0 0.0
    %718 = vmatpush1.msra.mxu0 0.0
    %719 = vmatprep.subr.mxu0 0.0
    %720 = vmatpush1.msra.mxu0 0.0
    %721 = vmatprep.subr.mxu0 0.0
    %722 = vmatpush1.msra.mxu0 0.0
    %723 = vmatprep.mubr.f32.mxu0 0.0
    %724 = vmatmul.mubr.f32.gmra.mrb[0].mxu0 %v657
    %v725 = vpop.f32.mrb[0].mxu0
    %v726 = vadd.f32 %v69, %v725
    %v727 = vpop.f32.mrb[0].mxu0
    %728 = vdwg.mxu0
    %v729 = vsel %vm232, %v637, 0
    %731 = vmatprep.subr.mxu0 0.0
    %732 = vmatpush1.msra.mxu0 %v60
    %733 = vmatprep.subr.mxu0 0.0
    %734 = vmatpush1.msra.mxu0 %v61
    %735 = vmatprep.subr.mxu0 0.0
    %736 = vmatpush1.msra.mxu0 %v62
    %737 = vmatprep.subr.mxu0 0.0
    %738 = vmatpush1.msra.mxu0 %v63
    %739 = vmatprep.subr.mxu0 0.0
    %740 = vmatpush1.msra.mxu0 0.0
    %741 = vmatprep.subr.mxu0 0.0
    %742 = vmatpush1.msra.mxu0 0.0
    %743 = vmatprep.subr.mxu0 0.0
    %744 = vmatpush1.msra.mxu0 0.0
    %745 = vmatprep.subr.mxu0 0.0
    %746 = vmatpush1.msra.mxu0 0.0
    %747 = vmatprep.subr.mxu0 0.0
    %748 = vmatpush1.msra.mxu0 0.0
    %749 = vmatprep.subr.mxu0 0.0
    %750 = vmatpush1.msra.mxu0 0.0
    %751 = vmatprep.subr.mxu0 0.0
    %752 = vmatpush1.msra.mxu0 0.0
    %753 = vmatprep.subr.mxu0 0.0
    %754 = vmatpush1.msra.mxu0 0.0
    %755 = vmatprep.subr.mxu0 0.0
    %756 = vmatpush1.msra.mxu0 0.0
    %757 = vmatprep.subr.mxu0 0.0
    %758 = vmatpush1.msra.mxu0 0.0
    %759 = vmatprep.subr.mxu0 0.0
    %760 = vmatpush1.msra.mxu0 0.0
    %761 = vmatprep.subr.mxu0 0.0
    %762 = vmatpush1.msra.mxu0 0.0
    %763 = vmatprep.subr.mxu0 0.0
    %764 = vmatpush1.msra.mxu0 0.0
    %765 = vmatprep.subr.mxu0 0.0
    %766 = vmatpush1.msra.mxu0 0.0
    %767 = vmatprep.subr.mxu0 0.0
    %768 = vmatpush1.msra.mxu0 0.0
    %769 = vmatprep.subr.mxu0 0.0
    %770 = vmatpush1.msra.mxu0 0.0
    %771 = vmatprep.subr.mxu0 0.0
    %772 = vmatpush1.msra.mxu0 0.0
    %773 = vmatprep.subr.mxu0 0.0
    %774 = vmatpush1.msra.mxu0 0.0
    %775 = vmatprep.subr.mxu0 0.0
    %776 = vmatpush1.msra.mxu0 0.0
    %777 = vmatprep.subr.mxu0 0.0
    %778 = vmatpush1.msra.mxu0 0.0
    %779 = vmatprep.subr.mxu0 0.0
    %780 = vmatpush1.msra.mxu0 0.0
    %781 = vmatprep.subr.mxu0 0.0
    %782 = vmatpush1.msra.mxu0 0.0
    %783 = vmatprep.subr.mxu0 0.0
    %784 = vmatpush1.msra.mxu0 0.0
    %785 = vmatprep.subr.mxu0 0.0
    %786 = vmatpush1.msra.mxu0 0.0
    %787 = vmatprep.subr.mxu0 0.0
    %788 = vmatpush1.msra.mxu0 0.0
    %789 = vmatprep.subr.mxu0 0.0
    %790 = vmatpush1.msra.mxu0 0.0
    %791 = vmatprep.subr.mxu0 0.0
    %792 = vmatpush1.msra.mxu0 0.0
    %793 = vmatprep.subr.mxu0 0.0
    %794 = vmatpush1.msra.mxu0 0.0
    %795 = vmatprep.mubr.f32.mxu0 0.0
    %796 = vmatmul.mubr.f32.gmra.mrb[0].mxu0 %v729
    %v797 = vpop.f32.mrb[0].mxu0
    %v798 = vadd.f32 0.0, %v797
    %v799 = vpop.f32.mrb[0].mxu0
    %800 = vdwg.mxu0
    %v801 = vadd.f32 %v726, %v798
    %v802 = vtanh.pop %v801
    %803 = vst.msk [vmem:[%s4 + $0x2] sm:$0x3] %vm152, %v802
    %v804 = vld [vmem:[#allocation2 + $0x5] sm:$0x1]
    %v805 = vld [vmem:[#allocation2 + $0xd] sm:$0x1]
    %v808 = vrot.slane %v805, 7
    %v809 = vsel %vm76, %v808, %v804
    %v810 = vsel %vm78, %v809, 0
    %812 = vmatprep.subr.mxu0 0.0
    %813 = vmatpush1.msra.mxu0 %v58
    %814 = vmatprep.subr.mxu0 0.0
    %815 = vmatpush1.msra.mxu0 %v59
    %816 = vmatprep.subr.mxu0 0.0
    %817 = vmatpush1.msra.mxu0 0.0
    %818 = vmatprep.subr.mxu0 0.0
    %819 = vmatpush1.msra.mxu0 0.0
    %820 = vmatprep.subr.mxu0 0.0
    %821 = vmatpush1.msra.mxu0 0.0
    %822 = vmatprep.subr.mxu0 0.0
    %823 = vmatpush1.msra.mxu0 0.0
    %824 = vmatprep.subr.mxu0 0.0
    %825 = vmatpush1.msra.mxu0 0.0
    %826 = vmatprep.subr.mxu0 0.0
    %827 = vmatpush1.msra.mxu0 0.0
    %828 = vmatprep.subr.mxu0 0.0
    %829 = vmatpush1.msra.mxu0 0.0
    %830 = vmatprep.subr.mxu0 0.0
    %831 = vmatpush1.msra.mxu0 0.0
    %832 = vmatprep.subr.mxu0 0.0
    %833 = vmatpush1.msra.mxu0 0.0
    %834 = vmatprep.subr.mxu0 0.0
    %835 = vmatpush1.msra.mxu0 0.0
    %836 = vmatprep.subr.mxu0 0.0
    %837 = vmatpush1.msra.mxu0 0.0
    %838 = vmatprep.subr.mxu0 0.0
    %839 = vmatpush1.msra.mxu0 0.0
    %840 = vmatprep.subr.mxu0 0.0
    %841 = vmatpush1.msra.mxu0 0.0
    %842 = vmatprep.subr.mxu0 0.0
    %843 = vmatpush1.msra.mxu0 0.0
    %844 = vmatprep.subr.mxu0 0.0
    %845 = vmatpush1.msra.mxu0 0.0
    %846 = vmatprep.subr.mxu0 0.0
    %847 = vmatpush1.msra.mxu0 0.0
    %848 = vmatprep.subr.mxu0 0.0
    %849 = vmatpush1.msra.mxu0 0.0
    %850 = vmatprep.subr.mxu0 0.0
    %851 = vmatpush1.msra.mxu0 0.0
    %852 = vmatprep.subr.mxu0 0.0
    %853 = vmatpush1.msra.mxu0 0.0
    %854 = vmatprep.subr.mxu0 0.0
    %855 = vmatpush1.msra.mxu0 0.0
    %856 = vmatprep.subr.mxu0 0.0
    %857 = vmatpush1.msra.mxu0 0.0
    %858 = vmatprep.subr.mxu0 0.0
    %859 = vmatpush1.msra.mxu0 0.0
    %860 = vmatprep.subr.mxu0 0.0
    %861 = vmatpush1.msra.mxu0 0.0
    %862 = vmatprep.subr.mxu0 0.0
    %863 = vmatpush1.msra.mxu0 0.0
    %864 = vmatprep.subr.mxu0 0.0
    %865 = vmatpush1.msra.mxu0 0.0
    %866 = vmatprep.subr.mxu0 0.0
    %867 = vmatpush1.msra.mxu0 0.0
    %868 = vmatprep.subr.mxu0 0.0
    %869 = vmatpush1.msra.mxu0 0.0
    %870 = vmatprep.subr.mxu0 0.0
    %871 = vmatpush1.msra.mxu0 0.0
    %872 = vmatprep.subr.mxu0 0.0
    %873 = vmatpush1.msra.mxu0 0.0
    %874 = vmatprep.subr.mxu0 0.0
    %875 = vmatpush1.msra.mxu0 0.0
    %876 = vmatprep.mubr.f32.mxu0 0.0
    %877 = vmatmul.mubr.f32.gmra.mrb[0].mxu0 %v810
    %v878 = vpop.f32.mrb[0].mxu0
    %v879 = vadd.f32 %v69, %v878
    %v880 = vpop.f32.mrb[0].mxu0
    %881 = vdwg.mxu0
    %v883 = vsel %vm232, %v802, 0
    %885 = vmatprep.subr.mxu0 0.0
    %886 = vmatpush1.msra.mxu0 %v60
    %887 = vmatprep.subr.mxu0 0.0
    %888 = vmatpush1.msra.mxu0 %v61
    %889 = vmatprep.subr.mxu0 0.0
    %890 = vmatpush1.msra.mxu0 %v62
    %891 = vmatprep.subr.mxu0 0.0
    %892 = vmatpush1.msra.mxu0 %v63
    %893 = vmatprep.subr.mxu0 0.0
    %894 = vmatpush1.msra.mxu0 0.0
    %895 = vmatprep.subr.mxu0 0.0
    %896 = vmatpush1.msra.mxu0 0.0
    %897 = vmatprep.subr.mxu0 0.0
    %898 = vmatpush1.msra.mxu0 0.0
    %899 = vmatprep.subr.mxu0 0.0
    %900 = vmatpush1.msra.mxu0 0.0
    %901 = vmatprep.subr.mxu0 0.0
    %902 = vmatpush1.msra.mxu0 0.0
    %903 = vmatprep.subr.mxu0 0.0
    %904 = vmatpush1.msra.mxu0 0.0
    %905 = vmatprep.subr.mxu0 0.0
    %906 = vmatpush1.msra.mxu0 0.0
    %907 = vmatprep.subr.mxu0 0.0
    %908 = vmatpush1.msra.mxu0 0.0
    %909 = vmatprep.subr.mxu0 0.0
    %910 = vmatpush1.msra.mxu0 0.0
    %911 = vmatprep.subr.mxu0 0.0
    %912 = vmatpush1.msra.mxu0 0.0
    %913 = vmatprep.subr.mxu0 0.0
    %914 = vmatpush1.msra.mxu0 0.0
    %915 = vmatprep.subr.mxu0 0.0
    %916 = vmatpush1.msra.mxu0 0.0
    %917 = vmatprep.subr.mxu0 0.0
    %918 = vmatpush1.msra.mxu0 0.0
    %919 = vmatprep.subr.mxu0 0.0
    %920 = vmatpush1.msra.mxu0 0.0
    %921 = vmatprep.subr.mxu0 0.0
    %922 = vmatpush1.msra.mxu0 0.0
    %923 = vmatprep.subr.mxu0 0.0
    %924 = vmatpush1.msra.mxu0 0.0
    %925 = vmatprep.subr.mxu0 0.0
    %926 = vmatpush1.msra.mxu0 0.0
    %927 = vmatprep.subr.mxu0 0.0
    %928 = vmatpush1.msra.mxu0 0.0
    %929 = vmatprep.subr.mxu0 0.0
    %930 = vmatpush1.msra.mxu0 0.0
    %931 = vmatprep.subr.mxu0 0.0
    %932 = vmatpush1.msra.mxu0 0.0
    %933 = vmatprep.subr.mxu0 0.0
    %934 = vmatpush1.msra.mxu0 0.0
    %935 = vmatprep.subr.mxu0 0.0
    %936 = vmatpush1.msra.mxu0 0.0
    %937 = vmatprep.subr.mxu0 0.0
    %938 = vmatpush1.msra.mxu0 0.0
    %939 = vmatprep.subr.mxu0 0.0
    %940 = vmatpush1.msra.mxu0 0.0
    %941 = vmatprep.subr.mxu0 0.0
    %942 = vmatpush1.msra.mxu0 0.0
    %943 = vmatprep.subr.mxu0 0.0
    %944 = vmatpush1.msra.mxu0 0.0
    %945 = vmatprep.subr.mxu0 0.0
    %946 = vmatpush1.msra.mxu0 0.0
    %947 = vmatprep.subr.mxu0 0.0
    %948 = vmatpush1.msra.mxu0 0.0
    %949 = vmatprep.mubr.f32.mxu0 0.0
    %950 = vmatmul.mubr.f32.gmra.mrb[0].mxu0 %v883
    %v951 = vpop.f32.mrb[0].mxu0
    %v952 = vadd.f32 0.0, %v951
    %v953 = vpop.f32.mrb[0].mxu0
    %954 = vdwg.mxu0
    %v955 = vadd.f32 %v879, %v952
    %v956 = vtanh.pop %v955
    %v959 = vunpack.c.l.s4 1983009808
    %v960 = vunpack.c.0.s8 %v959
    %v961 = vlaneseq
    %v962 = vshrl.u32 %v961, 7
    %v963 = vsub.s32 %v960, %v962
    %v964 = vrot.slane %v956, %v963
    %965 = vrot.lane.b32.xlu0 %v964, 32
    %v966 = vpop.permute.xlu0 %965
    %968 = vst.msk [vmem:[%s4 + $0x2] sm:$0x3] %vm319, %v966
    %v969 = vld [vmem:[#allocation2 + $0x6] sm:$0x1]
    %v970 = vld [vmem:[#allocation2 + $0xe] sm:$0x1]
    %v973 = vrot.slane %v970, 7
    %v974 = vsel %vm76, %v973, %v969
    %v975 = vsel %vm78, %v974, 0
    %977 = vmatprep.subr.mxu0 0.0
    %978 = vmatpush1.msra.mxu0 %v58
    %979 = vmatprep.subr.mxu0 0.0
    %980 = vmatpush1.msra.mxu0 %v59
    %981 = vmatprep.subr.mxu0 0.0
    %982 = vmatpush1.msra.mxu0 0.0
    %983 = vmatprep.subr.mxu0 0.0
    %984 = vmatpush1.msra.mxu0 0.0
    %985 = vmatprep.subr.mxu0 0.0
    %986 = vmatpush1.msra.mxu0 0.0
    %987 = vmatprep.subr.mxu0 0.0
    %988 = vmatpush1.msra.mxu0 0.0
    %989 = vmatprep.subr.mxu0 0.0
    %990 = vmatpush1.msra.mxu0 0.0
    %991 = vmatprep.subr.mxu0 0.0
    %992 = vmatpush1.msra.mxu0 0.0
    %993 = vmatprep.subr.mxu0 0.0
    %994 = vmatpush1.msra.mxu0 0.0
    %995 = vmatprep.subr.mxu0 0.0
    %996 = vmatpush1.msra.mxu0 0.0
    %997 = vmatprep.subr.mxu0 0.0
    %998 = vmatpush1.msra.mxu0 0.0
    %999 = vmatprep.subr.mxu0 0.0
    %1000 = vmatpush1.msra.mxu0 0.0
    %1001 = vmatprep.subr.mxu0 0.0
    %1002 = vmatpush1.msra.mxu0 0.0
    %1003 = vmatprep.subr.mxu0 0.0
    %1004 = vmatpush1.msra.mxu0 0.0
    %1005 = vmatprep.subr.mxu0 0.0
    %1006 = vmatpush1.msra.mxu0 0.0
    %1007 = vmatprep.subr.mxu0 0.0
    %1008 = vmatpush1.msra.mxu0 0.0
    %1009 = vmatprep.subr.mxu0 0.0
    %1010 = vmatpush1.msra.mxu0 0.0
    %1011 = vmatprep.subr.mxu0 0.0
    %1012 = vmatpush1.msra.mxu0 0.0
    %1013 = vmatprep.subr.mxu0 0.0
    %1014 = vmatpush1.msra.mxu0 0.0
    %1015 = vmatprep.subr.mxu0 0.0
    %1016 = vmatpush1.msra.mxu0 0.0
    %1017 = vmatprep.subr.mxu0 0.0
    %1018 = vmatpush1.msra.mxu0 0.0
    %1019 = vmatprep.subr.mxu0 0.0
    %1020 = vmatpush1.msra.mxu0 0.0
    %1021 = vmatprep.subr.mxu0 0.0
    %1022 = vmatpush1.msra.mxu0 0.0
    %1023 = vmatprep.subr.mxu0 0.0
    %1024 = vmatpush1.msra.mxu0 0.0
    %1025 = vmatprep.subr.mxu0 0.0
    %1026 = vmatpush1.msra.mxu0 0.0
    %1027 = vmatprep.subr.mxu0 0.0
    %1028 = vmatpush1.msra.mxu0 0.0
    %1029 = vmatprep.subr.mxu0 0.0
    %1030 = vmatpush1.msra.mxu0 0.0
    %1031 = vmatprep.subr.mxu0 0.0
    %1032 = vmatpush1.msra.mxu0 0.0
    %1033 = vmatprep.subr.mxu0 0.0
    %1034 = vmatpush1.msra.mxu0 0.0
    %1035 = vmatprep.subr.mxu0 0.0
    %1036 = vmatpush1.msra.mxu0 0.0
    %1037 = vmatprep.subr.mxu0 0.0
    %1038 = vmatpush1.msra.mxu0 0.0
    %1039 = vmatprep.subr.mxu0 0.0
    %1040 = vmatpush1.msra.mxu0 0.0
    %1041 = vmatprep.mubr.f32.mxu0 0.0
    %1042 = vmatmul.mubr.f32.gmra.mrb[0].mxu0 %v975
    %v1043 = vpop.f32.mrb[0].mxu0
    %v1044 = vadd.f32 %v69, %v1043
    %v1045 = vpop.f32.mrb[0].mxu0
    %1046 = vdwg.mxu0
    %v1047 = vsel %vm232, %v956, 0
    %1049 = vmatprep.subr.mxu0 0.0
    %1050 = vmatpush1.msra.mxu0 %v60
    %1051 = vmatprep.subr.mxu0 0.0
    %1052 = vmatpush1.msra.mxu0 %v61
    %1053 = vmatprep.subr.mxu0 0.0
    %1054 = vmatpush1.msra.mxu0 %v62
    %1055 = vmatprep.subr.mxu0 0.0
    %1056 = vmatpush1.msra.mxu0 %v63
    %1057 = vmatprep.subr.mxu0 0.0
    %1058 = vmatpush1.msra.mxu0 0.0
    %1059 = vmatprep.subr.mxu0 0.0
    %1060 = vmatpush1.msra.mxu0 0.0
    %1061 = vmatprep.subr.mxu0 0.0
    %1062 = vmatpush1.msra.mxu0 0.0
    %1063 = vmatprep.subr.mxu0 0.0
    %1064 = vmatpush1.msra.mxu0 0.0
    %1065 = vmatprep.subr.mxu0 0.0
    %1066 = vmatpush1.msra.mxu0 0.0
    %1067 = vmatprep.subr.mxu0 0.0
    %1068 = vmatpush1.msra.mxu0 0.0
    %1069 = vmatprep.subr.mxu0 0.0
    %1070 = vmatpush1.msra.mxu0 0.0
    %1071 = vmatprep.subr.mxu0 0.0
    %1072 = vmatpush1.msra.mxu0 0.0
    %1073 = vmatprep.subr.mxu0 0.0
    %1074 = vmatpush1.msra.mxu0 0.0
    %1075 = vmatprep.subr.mxu0 0.0
    %1076 = vmatpush1.msra.mxu0 0.0
    %1077 = vmatprep.subr.mxu0 0.0
    %1078 = vmatpush1.msra.mxu0 0.0
    %1079 = vmatprep.subr.mxu0 0.0
    %1080 = vmatpush1.msra.mxu0 0.0
    %1081 = vmatprep.subr.mxu0 0.0
    %1082 = vmatpush1.msra.mxu0 0.0
    %1083 = vmatprep.subr.mxu0 0.0
    %1084 = vmatpush1.msra.mxu0 0.0
    %1085 = vmatprep.subr.mxu0 0.0
    %1086 = vmatpush1.msra.mxu0 0.0
    %1087 = vmatprep.subr.mxu0 0.0
    %1088 = vmatpush1.msra.mxu0 0.0
    %1089 = vmatprep.subr.mxu0 0.0
    %1090 = vmatpush1.msra.mxu0 0.0
    %1091 = vmatprep.subr.mxu0 0.0
    %1092 = vmatpush1.msra.mxu0 0.0
    %1093 = vmatprep.subr.mxu0 0.0
    %1094 = vmatpush1.msra.mxu0 0.0
    %1095 = vmatprep.subr.mxu0 0.0
    %1096 = vmatpush1.msra.mxu0 0.0
    %1097 = vmatprep.subr.mxu0 0.0
    %1098 = vmatpush1.msra.mxu0 0.0
    %1099 = vmatprep.subr.mxu0 0.0
    %1100 = vmatpush1.msra.mxu0 0.0
    %1101 = vmatprep.subr.mxu0 0.0
    %1102 = vmatpush1.msra.mxu0 0.0
    %1103 = vmatprep.subr.mxu0 0.0
    %1104 = vmatpush1.msra.mxu0 0.0
    %1105 = vmatprep.subr.mxu0 0.0
    %1106 = vmatpush1.msra.mxu0 0.0
    %1107 = vmatprep.subr.mxu0 0.0
    %1108 = vmatpush1.msra.mxu0 0.0
    %1109 = vmatprep.subr.mxu0 0.0
    %1110 = vmatpush1.msra.mxu0 0.0
    %1111 = vmatprep.subr.mxu0 0.0
    %1112 = vmatpush1.msra.mxu0 0.0
    %1113 = vmatprep.mubr.f32.mxu0 0.0
    %1114 = vmatmul.mubr.f32.gmra.mrb[0].mxu0 %v1047
    %v1115 = vpop.f32.mrb[0].mxu0
    %v1116 = vadd.f32 0.0, %v1115
    %v1117 = vpop.f32.mrb[0].mxu0
    %1118 = vdwg.mxu0
    %v1119 = vadd.f32 %v1044, %v1116
    %v1120 = vtanh.pop %v1119
    %v1123 = vunpack.c.l.s4 1983009808
    %v1124 = vunpack.c.0.s8 %v1123
    %v1125 = vlaneseq
    %v1126 = vshrl.u32 %v1125, 7
    %v1127 = vsub.s32 %v1124, %v1126
    %v1128 = vrot.slane %v1120, %v1127
    %1129 = vrot.lane.b32.xlu0 %v1128, 64
    %v1130 = vpop.permute.xlu0 %1129
    %1132 = vst.msk [vmem:[%s4 + $0x2] sm:$0x3] %vm484, %v1130
    %v1133 = vld [vmem:[#allocation2 + $0x7] sm:$0x1]
    %v1134 = vld [vmem:[#allocation2 + $0xf] sm:$0x1]
    %v1137 = vrot.slane %v1134, 7
    %v1138 = vsel %vm76, %v1137, %v1133
    %v1139 = vsel %vm78, %v1138, 0
    %1141 = vmatprep.subr.mxu0 0.0
    %1142 = vmatpush1.msra.mxu0 %v58
    %1143 = vmatprep.subr.mxu0 0.0
    %1144 = vmatpush1.msra.mxu0 %v59
    %1145 = vmatprep.subr.mxu0 0.0
    %1146 = vmatpush1.msra.mxu0 0.0
    %1147 = vmatprep.subr.mxu0 0.0
    %1148 = vmatpush1.msra.mxu0 0.0
    %1149 = vmatprep.subr.mxu0 0.0
    %1150 = vmatpush1.msra.mxu0 0.0
    %1151 = vmatprep.subr.mxu0 0.0
    %1152 = vmatpush1.msra.mxu0 0.0
    %1153 = vmatprep.subr.mxu0 0.0
    %1154 = vmatpush1.msra.mxu0 0.0
    %1155 = vmatprep.subr.mxu0 0.0
    %1156 = vmatpush1.msra.mxu0 0.0
    %1157 = vmatprep.subr.mxu0 0.0
    %1158 = vmatpush1.msra.mxu0 0.0
    %1159 = vmatprep.subr.mxu0 0.0
    %1160 = vmatpush1.msra.mxu0 0.0
    %1161 = vmatprep.subr.mxu0 0.0
    %1162 = vmatpush1.msra.mxu0 0.0
    %1163 = vmatprep.subr.mxu0 0.0
    %1164 = vmatpush1.msra.mxu0 0.0
    %1165 = vmatprep.subr.mxu0 0.0
    %1166 = vmatpush1.msra.mxu0 0.0
    %1167 = vmatprep.subr.mxu0 0.0
    %1168 = vmatpush1.msra.mxu0 0.0
    %1169 = vmatprep.subr.mxu0 0.0
    %1170 = vmatpush1.msra.mxu0 0.0
    %1171 = vmatprep.subr.mxu0 0.0
    %1172 = vmatpush1.msra.mxu0 0.0
    %1173 = vmatprep.subr.mxu0 0.0
    %1174 = vmatpush1.msra.mxu0 0.0
    %1175 = vmatprep.subr.mxu0 0.0
    %1176 = vmatpush1.msra.mxu0 0.0
    %1177 = vmatprep.subr.mxu0 0.0
    %1178 = vmatpush1.msra.mxu0 0.0
    %1179 = vmatprep.subr.mxu0 0.0
    %1180 = vmatpush1.msra.mxu0 0.0
    %1181 = vmatprep.subr.mxu0 0.0
    %1182 = vmatpush1.msra.mxu0 0.0
    %1183 = vmatprep.subr.mxu0 0.0
    %1184 = vmatpush1.msra.mxu0 0.0
    %1185 = vmatprep.subr.mxu0 0.0
    %1186 = vmatpush1.msra.mxu0 0.0
    %1187 = vmatprep.subr.mxu0 0.0
    %1188 = vmatpush1.msra.mxu0 0.0
    %1189 = vmatprep.subr.mxu0 0.0
    %1190 = vmatpush1.msra.mxu0 0.0
    %1191 = vmatprep.subr.mxu0 0.0
    %1192 = vmatpush1.msra.mxu0 0.0
    %1193 = vmatprep.subr.mxu0 0.0
    %1194 = vmatpush1.msra.mxu0 0.0
    %1195 = vmatprep.subr.mxu0 0.0
    %1196 = vmatpush1.msra.mxu0 0.0
    %1197 = vmatprep.subr.mxu0 0.0
    %1198 = vmatpush1.msra.mxu0 0.0
    %1199 = vmatprep.subr.mxu0 0.0
    %1200 = vmatpush1.msra.mxu0 0.0
    %1201 = vmatprep.subr.mxu0 0.0
    %1202 = vmatpush1.msra.mxu0 0.0
    %1203 = vmatprep.subr.mxu0 0.0
    %1204 = vmatpush1.msra.mxu0 0.0
    %1205 = vmatprep.mubr.f32.mxu0 0.0
    %1206 = vmatmul.mubr.f32.gmra.mrb[0].mxu0 %v1139
    %v1207 = vpop.f32.mrb[0].mxu0
    %v1208 = vadd.f32 %v69, %v1207
    %v1209 = vpop.f32.mrb[0].mxu0
    %1210 = vdwg.mxu0
    %v1211 = vsel %vm232, %v1120, 0
    %1213 = vmatprep.subr.mxu0 0.0
    %1214 = vmatpush1.msra.mxu0 %v60
    %1215 = vmatprep.subr.mxu0 0.0
    %1216 = vmatpush1.msra.mxu0 %v61
    %1217 = vmatprep.subr.mxu0 0.0
    %1218 = vmatpush1.msra.mxu0 %v62
    %1219 = vmatprep.subr.mxu0 0.0
    %1220 = vmatpush1.msra.mxu0 %v63
    %1221 = vmatprep.subr.mxu0 0.0
    %1222 = vmatpush1.msra.mxu0 0.0
    %1223 = vmatprep.subr.mxu0 0.0
    %1224 = vmatpush1.msra.mxu0 0.0
    %1225 = vmatprep.subr.mxu0 0.0
    %1226 = vmatpush1.msra.mxu0 0.0
    %1227 = vmatprep.subr.mxu0 0.0
    %1228 = vmatpush1.msra.mxu0 0.0
    %1229 = vmatprep.subr.mxu0 0.0
    %1230 = vmatpush1.msra.mxu0 0.0
    %1231 = vmatprep.subr.mxu0 0.0
    %1232 = vmatpush1.msra.mxu0 0.0
    %1233 = vmatprep.subr.mxu0 0.0
    %1234 = vmatpush1.msra.mxu0 0.0
    %1235 = vmatprep.subr.mxu0 0.0
    %1236 = vmatpush1.msra.mxu0 0.0
    %1237 = vmatprep.subr.mxu0 0.0
    %1238 = vmatpush1.msra.mxu0 0.0
    %1239 = vmatprep.subr.mxu0 0.0
    %1240 = vmatpush1.msra.mxu0 0.0
    %1241 = vmatprep.subr.mxu0 0.0
    %1242 = vmatpush1.msra.mxu0 0.0
    %1243 = vmatprep.subr.mxu0 0.0
    %1244 = vmatpush1.msra.mxu0 0.0
    %1245 = vmatprep.subr.mxu0 0.0
    %1246 = vmatpush1.msra.mxu0 0.0
    %1247 = vmatprep.subr.mxu0 0.0
    %1248 = vmatpush1.msra.mxu0 0.0
    %1249 = vmatprep.subr.mxu0 0.0
    %1250 = vmatpush1.msra.mxu0 0.0
    %1251 = vmatprep.subr.mxu0 0.0
    %1252 = vmatpush1.msra.mxu0 0.0
    %1253 = vmatprep.subr.mxu0 0.0
    %1254 = vmatpush1.msra.mxu0 0.0
    %1255 = vmatprep.subr.mxu0 0.0
    %1256 = vmatpush1.msra.mxu0 0.0
    %1257 = vmatprep.subr.mxu0 0.0
    %1258 = vmatpush1.msra.mxu0 0.0
    %1259 = vmatprep.subr.mxu0 0.0
    %1260 = vmatpush1.msra.mxu0 0.0
    %1261 = vmatprep.subr.mxu0 0.0
    %1262 = vmatpush1.msra.mxu0 0.0
    %1263 = vmatprep.subr.mxu0 0.0
    %1264 = vmatpush1.msra.mxu0 0.0
    %1265 = vmatprep.subr.mxu0 0.0
    %1266 = vmatpush1.msra.mxu0 0.0
    %1267 = vmatprep.subr.mxu0 0.0
    %1268 = vmatpush1.msra.mxu0 0.0
    %1269 = vmatprep.subr.mxu0 0.0
    %1270 = vmatpush1.msra.mxu0 0.0
    %1271 = vmatprep.subr.mxu0 0.0
    %1272 = vmatpush1.msra.mxu0 0.0
    %1273 = vmatprep.subr.mxu0 0.0
    %1274 = vmatpush1.msra.mxu0 0.0
    %1275 = vmatprep.subr.mxu0 0.0
    %1276 = vmatpush1.msra.mxu0 0.0
    %1277 = vmatprep.mubr.f32.mxu0 0.0
    %1278 = vmatmul.mubr.f32.gmra.mrb[0].mxu0 %v1211
    %v1279 = vpop.f32.mrb[0].mxu0
    %v1280 = vadd.f32 0.0, %v1279
    %v1281 = vpop.f32.mrb[0].mxu0
    %1282 = vdwg.mxu0
    %v1283 = vadd.f32 %v1208, %v1280
    %v1284 = vtanh.pop %v1283
    %v1287 = vunpack.c.l.s4 1983009808
    %v1288 = vunpack.c.0.s8 %v1287
    %v1289 = vlaneseq
    %v1290 = vshrl.u32 %v1289, 7
    %v1291 = vsub.s32 %v1288, %v1290
    %v1292 = vrot.slane %v1284, %v1291
    %1293 = vrot.lane.b32.xlu0 %v1292, 96
    %v1294 = vpop.permute.xlu0 %1293
    %1296 = vst.msk [vmem:[%s4 + $0x2] sm:$0x3] %vm649, %v1294
    // Predicated region
    $region30: #{simple_rnn_encoder.1} parent=1 // pred_check
      _
    $region31: #{simple_rnn_encoder.1} parent=1 // pred_check_branch
      %1298 = sbr.rel (0) target = $region33
    $region32: #{simple_rnn_encoder.1} parent=1 // pred_region
      _
    $region33: #{simple_rnn_encoder.1} parent=1 // pred_fallthru
      _
    // Predicated region
    $region34: #{simple_rnn_encoder.1} parent=1 // pred_check
      _
    $region35: #{simple_rnn_encoder.1} parent=1 // pred_check_branch
      %1300 = sbr.rel (0) target = $region37
    $region36: #{simple_rnn_encoder.1} parent=1 // pred_region
      _
    $region37: #{simple_rnn_encoder.1} parent=1 // pred_fallthru
      _
    %1301 = vsyncpa [#allocation3], 1
    %1302 = vsyncpa [#allocation5], 1

</llo_original>
